<compile_context>
chip_gen: v5e
topology: v5e:2x2
jax: 0.10.0
libtpu: 0.0.40
codegen_flags: <defaults>
</compile_context>

<pallas_src>
import functools

import jax
import jax.numpy as jnp
from jax import lax
from jax.experimental import pallas as pl
from jax.experimental.pallas import tpu as pltpu


BN_EPS = 1e-5
_VMEM = pl.BlockSpec(memory_space=pltpu.MemorySpace.VMEM)


# ----------------------------------------------------------------------------
# Single fused Pallas kernel: every layer (messages -> aggregation -> update
# -> ReLU -> BatchNorm over 2N rows), all resident in VMEM.
# ----------------------------------------------------------------------------
def _encoder_kernel(*refs, n_layer, d, mxu_dtype):
    f32 = jnp.float32
    x_ref, ea_ref, eidx_ref = refs[0], refs[1], refs[2]
    o_ref = refs[-1]
    layer_refs = refs[3:-1]            # 6 refs per layer: wx, we, wur, b, gamma, beta

    n = x_ref.shape[0]
    d2 = 2 * d

    one16 = jnp.ones((), mxu_dtype)
    zero16 = jnp.zeros((), mxu_dtype)

    # ---- built once, reused by every layer ---------------------------------
    ea16 = ea_ref[...].astype(mxu_dtype)                          # [E, De+1]
    eidx = eidx_ref[...]                                          # [2, E]
    n_edges = eidx.shape[1]

    node_iota = lax.broadcasted_iota(jnp.int32, (n, n_edges), 0)
    # p0[v, e] = 1 iff edge_index[0, e] == v ;  p1[v, e] = 1 iff edge_index[1, e] == v
    p0 = jnp.where(node_iota == eidx[0:1, :], one16, zero16)      # [N, E]
    p1 = jnp.where(node_iota == eidx[1:2, :], one16, zero16)      # [N, E]

    nt = (((1,), (1,)), ((), ()))                                 # contract over E
    a_i = lax.dot_general(p0, p1, nt, preferred_element_type=f32)  # p0 @ p1.T  [N, N]
    a_j = a_i.T                                                    # == p1 @ p0.T (XLU)

    # stacked scatter operand: one 2N+2E-deep matmul replaces 4 aggregation pushes
    S = jnp.concatenate(
        [a_i.astype(mxu_dtype), a_j.astype(mxu_dtype), p0, p1], axis=1)  # [N, 2N+2E]

    # lane masks splitting the packed [i | j] halves (built once, reused per layer)
    mask_n = lax.broadcasted_iota(jnp.int32, (n, d2), 1) < d
    mask_e = lax.broadcasted_iota(jnp.int32, (n_edges, d2), 1) < d
    inv_2n = 1.0 / (2.0 * n)

    h = x_ref[...]                                                # f32, [N, F] at layer 0
    for layer in range(n_layer):
        wx, we, wur, b, gamma, beta = layer_refs[6 * layer: 6 * layer + 6]
        hin16 = h.astype(mxu_dtype)

        # -- message terms: ONE matmul covers both conv paths each (lane-packed) --
        xw = jnp.dot(hin16, wx[...], preferred_element_type=f32).astype(mxu_dtype)  # [N, 2d]
        ew = jnp.dot(ea16, we[...], preferred_element_type=f32).astype(mxu_dtype)   # [E, 2d]

        # -- stacked message operand [xw_i ; xw_j ; ew_i ; ew_j] -> one agg matmul --
        rhs = jnp.concatenate([
            jnp.where(mask_n, xw, zero16),       # i-path x-term
            jnp.where(mask_n, zero16, xw),       # j-path x-term
            jnp.where(mask_e, ew, zero16),       # i-path edge-term (+ folded b_msg)
            jnp.where(mask_e, zero16, ew),       # j-path edge-term (+ folded b_msg)
        ], axis=0)                                                # [2N+2E, 2d]

        agg = jnp.dot(S, rhs, preferred_element_type=f32)         # [N, 2d] f32

        # -- fused update + root: [agg | hin] @ [Wupd ; Wroot] + b, then ReLU --
        u = jnp.concatenate([agg.astype(mxu_dtype), hin16], axis=1)
        hpre = jnp.dot(u, wur[...], preferred_element_type=f32) + b[...]
        hrelu = jnp.maximum(hpre, 0.0)                            # f32

        # -- BatchNorm1d over the 2N concatenated rows (training batch stats) --
        # feature c lives in lanes c and d+c; combine halves via an XLU roll.
        s = jnp.sum(hrelu, axis=0, keepdims=True)                 # [1, 2d]
        mean = (s + pltpu.roll(s, shift=d, axis=1)) * inv_2n
        c = hrelu - mean
        sq = jnp.sum(c * c, axis=0, keepdims=True)
        var = (sq + pltpu.roll(sq, shift=d, axis=1)) * inv_2n
        h = c * lax.rsqrt(var + BN_EPS) * gamma[...] + beta[...]
        # TODO(synk): dropout assumed 0.0 (deterministic forward) -> identity.

    o_ref[...] = h                                                # [N, 2d] lane-dense store


def gbn_encoder_forward(packed_params, x, edge_index, edge_attr, *,
                        n_layer, d_layer, mxu_dtype=jnp.bfloat16, jk="last"):
    if n_layer < 1:
        raise ValueError("Number of GNN layers must be greater than 0.")
    n_edges = edge_attr.shape[0]
    # fold the per-edge message bias into the edge matmul (ones column, done once)
    ea_aug = jnp.concatenate(
        [edge_attr, jnp.ones((n_edges, 1), edge_attr.dtype)], axis=1)

    flat = []
    for lp in packed_params:
        flat += [lp["wx"], lp["we"], lp["wur"], lp["b"], lp["gamma"], lp["beta"]]

    n = x.shape[0]
    d2 = 2 * d_layer
    kernel = functools.partial(_encoder_kernel, n_layer=n_layer, d=d_layer,
                               mxu_dtype=mxu_dtype)
    h = pl.pallas_call(
        kernel,
        out_shape=jax.ShapeDtypeStruct((n, d2), jnp.float32),
        in_specs=[_VMEM] * (3 + 6 * n_layer),
        out_specs=_VMEM,
    )(x, ea_aug, edge_index, *flat)

    if jk != "last":
        raise NotImplementedError("only JK='last' is exercised here")  # TODO(synk): concat/max/sum
    return h[:, :d_layer], h[:, d_layer:]


# ----------------------------------------------------------------------------
# Parameter init (raw, per-conv) and host-side packing into fused weight slabs
# ----------------------------------------------------------------------------
def init_raw_params(key, n_layer, d_feature, d_layer, d_edge):
    raw = {"node": [], "edge": [], "gamma": [], "beta": []}
    for layer in range(n_layer):
        d_in = d_feature if layer == 0 else d_layer
        for which in ("node", "edge"):
            key, k1, k2, k3, k4, k5, k6 = jax.random.split(key, 7)
            raw[which].append({
                "w_x":    0.1 * jax.random.normal(k1, (d_in, d_layer), jnp.float32),
                "w_e":    0.1 * jax.random.normal(k2, (d_edge, d_layer), jnp.float32),
                "b_msg": 0.05 * jax.random.normal(k3, (d_layer,), jnp.float32),
                "w_upd":  0.1 * jax.random.normal(k4, (d_layer, d_layer), jnp.float32),
                "w_root": 0.1 * jax.random.normal(k5, (d_in, d_layer), jnp.float32),
                "b":     0.05 * jax.random.normal(k6, (d_layer,), jnp.float32),
            })
        raw["gamma"].append(jnp.ones((d_layer,), jnp.float32))   # nn.BatchNorm1d defaults
        raw["beta"].append(jnp.zeros((d_layer,), jnp.float32))
    return raw


def _block_diag(a, b):
    d0, d1 = a.shape
    e0, e1 = b.shape
    z01 = jnp.zeros((d0, e1), jnp.float32)
    z10 = jnp.zeros((e0, d1), jnp.float32)
    return jnp.concatenate([jnp.concatenate([a, z01], axis=1),
                            jnp.concatenate([z10, b], axis=1)], axis=0)


def pack_params(raw, n_layer, weight_dtype):
    """Pack per-conv weights into the fused slabs consumed by the kernel.
    Matmul weight slabs are stored in `weight_dtype` (bf16 on the fast path);
    bias / gamma / beta stay f32."""
    packed = []
    for layer in range(n_layer):
        first = layer == 0
        rn, re_ = raw["node"][layer], raw["edge"][layer]
        # x-part of the message: both paths in one slab (block-diag for layers > 0)
        if first:
            wx = jnp.concatenate([rn["w_x"], re_["w_x"]], axis=1)
        else:
            wx = _block_diag(rn["w_x"], re_["w_x"])
        # edge-part of the message with b_msg folded via the ones column
        we_i = jnp.concatenate([rn["w_e"], rn["b_msg"][None, :]], axis=0)
        we_j = jnp.concatenate([re_["w_e"], re_["b_msg"][None, :]], axis=0)
        we = jnp.concatenate([we_i, we_j], axis=1)
        # fused update + root: rows = [Wupd (block-diag) ; Wroot]
        wupd = _block_diag(rn["w_upd"], re_["w_upd"])
        if first:
            wroot = jnp.concatenate([rn["w_root"], re_["w_root"]], axis=1)
        else:
            wroot = _block_diag(rn["w_root"], re_["w_root"])
        wur = jnp.concatenate([wupd, wroot], axis=0)
        packed.append({
            "wx": wx.astype(weight_dtype),
            "we": we.astype(weight_dtype),
            "wur": wur.astype(weight_dtype),
            "b": jnp.concatenate([rn["b"], re_["b"]])[None, :],
            "gamma": jnp.concatenate([raw["gamma"][layer]] * 2)[None, :],
            "beta": jnp.concatenate([raw["beta"][layer]] * 2)[None, :],
        })
    return packed


# ----------------------------------------------------------------------------
# Pure-JAX f32 reference (same GNNConv assumption) for correctness checks
# ----------------------------------------------------------------------------
def _gnn_conv_ref(x, edge_index, edge_attr, rp, flow):
    if flow == "source_to_target":
        src, dst = edge_index[0], edge_index[1]
    else:                                     # 'target_to_source'
        src, dst = edge_index[1], edge_index[0]
    msg = x[src] @ rp["w_x"] + edge_attr @ rp["w_e"] + rp["b_msg"]
    agg = jax.ops.segment_sum(msg, dst, num_segments=x.shape[0])
    return agg @ rp["w_upd"] + x @ rp["w_root"] + rp["b"]


def gbn_encoder_reference(raw, x, edge_index, edge_attr, *, n_layer):
    h_i = h_j = x
    for layer in range(n_layer):
        hi = jax.nn.relu(_gnn_conv_ref(h_i, edge_index, edge_attr,
                                       raw["node"][layer], "target_to_source"))
        hj = jax.nn.relu(_gnn_conv_ref(h_j, edge_index, edge_attr,
                                       raw["edge"][layer], "source_to_target"))
        h = jnp.concatenate([hi, hj], axis=0)
        mean = jnp.mean(h, axis=0, keepdims=True)
        var = jnp.mean((h - mean) ** 2, axis=0, keepdims=True)
        h = (h - mean) * lax.rsqrt(var + BN_EPS) * raw["gamma"][layer] + raw["beta"][layer]
        n = hi.shape[0]
        h_i, h_j = h[:n], h[n:]
    return h_i, h_j


# ----------------------------------------------------------------------------
# main
# ----------------------------------------------------------------------------
if __name__ == "__main__":
    # d_layer = 64 so the packed [h_i | h_j] slab (and the final store) is a
    # full 128-lane vreg width -> lane-dense stores, no masked vst.
    N_NODES, N_EDGES, N_LAYER = 16, 40, 2
    D_FEATURE, D_LAYER, D_EDGE = 16, 64, 8

    key = jax.random.PRNGKey(0)
    k_x, k_e, k_a, k_p = jax.random.split(key, 4)
    x = jax.random.normal(k_x, (N_NODES, D_FEATURE), jnp.float32)
    edge_index = jax.random.randint(k_e, (2, N_EDGES), 0, N_NODES, dtype=jnp.int32)
    edge_attr = jax.random.normal(k_a, (N_EDGES, D_EDGE), jnp.float32)

    raw = init_raw_params(k_p, N_LAYER, D_FEATURE, D_LAYER, D_EDGE)

    ref_i, ref_j = gbn_encoder_reference(raw, x, edge_index, edge_attr, n_layer=N_LAYER)
    ref = jnp.concatenate([ref_i, ref_j], axis=0)

    def rel_err(a, b):
        return float(jnp.linalg.norm(a - b) / jnp.linalg.norm(b))

    # (1) f32 MXU operands: strict parity with the f32 pure-JAX reference.
    packed_f32 = pack_params(raw, N_LAYER, jnp.float32)
    fwd_f32 = jax.jit(functools.partial(
        gbn_encoder_forward, n_layer=N_LAYER, d_layer=D_LAYER, mxu_dtype=jnp.float32))
    hi32, hj32 = fwd_f32(packed_f32, x, edge_index, edge_attr)
    jax.block_until_ready((hi32, hj32))
    err32 = rel_err(jnp.concatenate([hi32, hj32], axis=0), ref)
    assert err32 < 2e-3, f"f32 fused kernel mismatch: rel err {err32}"

    # (2) bf16 MXU operands (default fast path on v5e/v6e/v7x), f32 accumulation,
    #     f32 BN math; fewer requantized intermediates than the previous version.
    packed_bf16 = pack_params(raw, N_LAYER, jnp.bfloat16)
    fwd_bf16 = jax.jit(functools.partial(
        gbn_encoder_forward, n_layer=N_LAYER, d_layer=D_LAYER, mxu_dtype=jnp.bfloat16))
    h_i, h_j = fwd_bf16(packed_bf16, x, edge_index, edge_attr)
    jax.block_until_ready((h_i, h_j))
    err16 = rel_err(jnp.concatenate([h_i, h_j], axis=0), ref)
    assert err16 < 0.1, f"bf16 fused kernel mismatch: rel err {err16}"

    assert h_i.shape == (N_NODES, D_LAYER) and h_j.shape == (N_NODES, D_LAYER)
    print("KERNEL_OK")
</pallas_src>

<mosaic_0001>
module attributes {stable_mosaic.version = 11 : i64} {
  func.func @_encoder_kernel(%arg0: memref<16x16xf32, #tpu.memory_space<vmem>>, %arg1: memref<40x9xf32, #tpu.memory_space<vmem>>, %arg2: memref<2x40xi32, #tpu.memory_space<vmem>>, %arg3: memref<16x128xf32, #tpu.memory_space<vmem>>, %arg4: memref<9x128xf32, #tpu.memory_space<vmem>>, %arg5: memref<144x128xf32, #tpu.memory_space<vmem>>, %arg6: memref<1x128xf32, #tpu.memory_space<vmem>>, %arg7: memref<1x128xf32, #tpu.memory_space<vmem>>, %arg8: memref<1x128xf32, #tpu.memory_space<vmem>>, %arg9: memref<128x128xf32, #tpu.memory_space<vmem>>, %arg10: memref<9x128xf32, #tpu.memory_space<vmem>>, %arg11: memref<256x128xf32, #tpu.memory_space<vmem>>, %arg12: memref<1x128xf32, #tpu.memory_space<vmem>>, %arg13: memref<1x128xf32, #tpu.memory_space<vmem>>, %arg14: memref<1x128xf32, #tpu.memory_space<vmem>>, %arg15: memref<16x128xf32, #tpu.memory_space<vmem>>) attributes {dimension_semantics = [], scalar_prefetch = 0 : i64, scratch_operands = 0 : i64, tpu.core_type = #tpu.core_type<tc>} {
    %c0 = arith.constant 0 : index
    %c0_0 = arith.constant 0 : index
    %0 = vector.load %arg1[%c0, %c0_0] : memref<40x9xf32, #tpu.memory_space<vmem>>, vector<40x9xf32>
    %c0_1 = arith.constant 0 : index
    %c0_2 = arith.constant 0 : index
    %1 = vector.load %arg2[%c0_1, %c0_2] : memref<2x40xi32, #tpu.memory_space<vmem>>, vector<2x40xi32>
    %2 = tpu.iota {dimensions = array<i32: 0>} : vector<16x40xi32>
    %3 = vector.extract_strided_slice %1 {offsets = [0, 0], sizes = [1, 40], strides = [1, 1]} : vector<2x40xi32> to vector<1x40xi32>
    %4 = vector.broadcast %3 : vector<1x40xi32> to vector<16x40xi32>
    %5 = arith.cmpi eq, %2, %4 : vector<16x40xi32>
    %cst = arith.constant 1.000000e+00 : f32
    %cst_3 = arith.constant 0.000000e+00 : f32
    %6 = vector.broadcast %cst : f32 to vector<16x40xf32>
    %7 = vector.broadcast %cst_3 : f32 to vector<16x40xf32>
    %8 = arith.select %5, %6, %7 : vector<16x40xi1>, vector<16x40xf32>
    %9 = vector.extract_strided_slice %1 {offsets = [1, 0], sizes = [1, 40], strides = [1, 1]} : vector<2x40xi32> to vector<1x40xi32>
    %10 = vector.broadcast %9 : vector<1x40xi32> to vector<16x40xi32>
    %11 = arith.cmpi eq, %2, %10 : vector<16x40xi32>
    %cst_4 = arith.constant 1.000000e+00 : f32
    %cst_5 = arith.constant 0.000000e+00 : f32
    %12 = vector.broadcast %cst_4 : f32 to vector<16x40xf32>
    %13 = vector.broadcast %cst_5 : f32 to vector<16x40xf32>
    %14 = arith.select %11, %12, %13 : vector<16x40xi1>, vector<16x40xf32>
    %cst_6 = arith.constant dense<0.000000e+00> : vector<16x16xf32>
    %15 = tpu.matmul %8, %14, %cst_6 {dimension_numbers = #tpu.dot_dimension_numbers<[1], [1], [0], [0], [0, 0, 1, 0], [], []>} : vector<16x40xf32>, vector<16x40xf32>, vector<16x16xf32> -> vector<16x16xf32>
    %16 = tpu.transpose %15, [1, 0] : vector<16x16xf32> -> vector<16x16xf32>
    %17 = tpu.concatenate %15, %16, %8, %14 in 1 : vector<16x16xf32>, vector<16x16xf32>, vector<16x40xf32>, vector<16x40xf32> -> vector<16x112xf32>
    %18 = tpu.iota {dimensions = array<i32: 1>} : vector<16x128xi32>
    %c64_i32 = arith.constant 64 : i32
    %19 = vector.broadcast %c64_i32 : i32 to vector<16x128xi32>
    %20 = arith.cmpi slt, %18, %19 : vector<16x128xi32>
    %21 = tpu.iota {dimensions = array<i32: 1>} : vector<40x128xi32>
    %c64_i32_7 = arith.constant 64 : i32
    %22 = vector.broadcast %c64_i32_7 : i32 to vector<40x128xi32>
    %23 = arith.cmpi slt, %21, %22 : vector<40x128xi32>
    %c0_8 = arith.constant 0 : index
    %c0_9 = arith.constant 0 : index
    %24 = vector.load %arg0[%c0_8, %c0_9] : memref<16x16xf32, #tpu.memory_space<vmem>>, vector<16x16xf32>
    %c0_10 = arith.constant 0 : index
    %c0_11 = arith.constant 0 : index
    %25 = vector.load %arg3[%c0_10, %c0_11] : memref<16x128xf32, #tpu.memory_space<vmem>>, vector<16x128xf32>
    %cst_12 = arith.constant dense<0.000000e+00> : vector<16x128xf32>
    %26 = tpu.matmul %24, %25, %cst_12 {dimension_numbers = #tpu.dot_dimension_numbers<[1], [0], [0], [1], [0, 0, 1, 1], [], []>} : vector<16x16xf32>, vector<16x128xf32>, vector<16x128xf32> -> vector<16x128xf32>
    %c0_13 = arith.constant 0 : index
    %c0_14 = arith.constant 0 : index
    %27 = vector.load %arg4[%c0_13, %c0_14] : memref<9x128xf32, #tpu.memory_space<vmem>>, vector<9x128xf32>
    %cst_15 = arith.constant dense<0.000000e+00> : vector<40x128xf32>
    %28 = tpu.matmul %0, %27, %cst_15 {dimension_numbers = #tpu.dot_dimension_numbers<[1], [0], [0], [1], [0, 0, 1, 1], [], []>} : vector<40x9xf32>, vector<9x128xf32>, vector<40x128xf32> -> vector<40x128xf32>
    %cst_16 = arith.constant 0.000000e+00 : f32
    %29 = vector.broadcast %cst_16 : f32 to vector<16x128xf32>
    %30 = arith.select %20, %26, %29 : vector<16x128xi1>, vector<16x128xf32>
    %cst_17 = arith.constant 0.000000e+00 : f32
    %31 = vector.broadcast %cst_17 : f32 to vector<16x128xf32>
    %32 = arith.select %20, %31, %26 : vector<16x128xi1>, vector<16x128xf32>
    %cst_18 = arith.constant 0.000000e+00 : f32
    %33 = vector.broadcast %cst_18 : f32 to vector<40x128xf32>
    %34 = arith.select %23, %28, %33 : vector<40x128xi1>, vector<40x128xf32>
    %cst_19 = arith.constant 0.000000e+00 : f32
    %35 = vector.broadcast %cst_19 : f32 to vector<40x128xf32>
    %36 = arith.select %23, %35, %28 : vector<40x128xi1>, vector<40x128xf32>
    %37 = tpu.concatenate %30, %32, %34, %36 in 0 : vector<16x128xf32>, vector<16x128xf32>, vector<40x128xf32>, vector<40x128xf32> -> vector<112x128xf32>
    %cst_20 = arith.constant dense<0.000000e+00> : vector<16x128xf32>
    %38 = tpu.matmul %17, %37, %cst_20 {dimension_numbers = #tpu.dot_dimension_numbers<[1], [0], [0], [1], [0, 0, 1, 1], [], []>} : vector<16x112xf32>, vector<112x128xf32>, vector<16x128xf32> -> vector<16x128xf32>
    %39 = tpu.concatenate %38, %24 in 1 : vector<16x128xf32>, vector<16x16xf32> -> vector<16x144xf32>
    %c0_21 = arith.constant 0 : index
    %c0_22 = arith.constant 0 : index
    %40 = vector.load %arg5[%c0_21, %c0_22] : memref<144x128xf32, #tpu.memory_space<vmem>>, vector<144x128xf32>
    %cst_23 = arith.constant dense<0.000000e+00> : vector<16x128xf32>
    %41 = tpu.matmul %39, %40, %cst_23 {dimension_numbers = #tpu.dot_dimension_numbers<[1], [0], [0], [1], [0, 0, 1, 1], [], []>} : vector<16x144xf32>, vector<144x128xf32>, vector<16x128xf32> -> vector<16x128xf32>
    %c0_24 = arith.constant 0 : index
    %c0_25 = arith.constant 0 : index
    %42 = vector.load %arg6[%c0_24, %c0_25] : memref<1x128xf32, #tpu.memory_space<vmem>>, vector<1x128xf32>
    %43 = vector.broadcast %42 : vector<1x128xf32> to vector<16x128xf32>
    %44 = arith.addf %41, %43 : vector<16x128xf32>
    %cst_26 = arith.constant 0.000000e+00 : f32
    %45 = vector.broadcast %cst_26 : f32 to vector<16x128xf32>
    %46 = arith.maximumf %44, %45 : vector<16x128xf32>
    %cst_27 = arith.constant dense<0.000000e+00> : vector<128xf32>
    %47 = vector.multi_reduction <add>, %46, %cst_27 [0] : vector<16x128xf32> to vector<128xf32>
    %48 = vector.shape_cast %47 : vector<128xf32> to vector<1x128xf32>
    %c64_i32_28 = arith.constant 64 : i32
    %49 = tpu.dynamic_rotate %48 by %c64_i32_28 dim 1 : vector<1x128xf32>, i32 -> vector<1x128xf32>
    %50 = arith.addf %48, %49 : vector<1x128xf32>
    %cst_29 = arith.constant 3.125000e-02 : f32
    %51 = vector.broadcast %cst_29 : f32 to vector<1x128xf32>
    %52 = arith.mulf %50, %51 : vector<1x128xf32>
    %53 = vector.broadcast %52 : vector<1x128xf32> to vector<16x128xf32>
    %54 = arith.subf %46, %53 : vector<16x128xf32>
    %55 = arith.mulf %54, %54 : vector<16x128xf32>
    %cst_30 = arith.constant dense<0.000000e+00> : vector<128xf32>
    %56 = vector.multi_reduction <add>, %55, %cst_30 [0] : vector<16x128xf32> to vector<128xf32>
    %57 = vector.shape_cast %56 : vector<128xf32> to vector<1x128xf32>
    %c64_i32_31 = arith.constant 64 : i32
    %58 = tpu.dynamic_rotate %57 by %c64_i32_31 dim 1 : vector<1x128xf32>, i32 -> vector<1x128xf32>
    %59 = arith.addf %57, %58 : vector<1x128xf32>
    %cst_32 = arith.constant 3.125000e-02 : f32
    %60 = vector.broadcast %cst_32 : f32 to vector<1x128xf32>
    %61 = arith.mulf %59, %60 : vector<1x128xf32>
    %cst_33 = arith.constant 9.99999974E-6 : f32
    %62 = vector.broadcast %cst_33 : f32 to vector<1x128xf32>
    %63 = arith.addf %61, %62 : vector<1x128xf32>
    %64 = math.rsqrt %63 : vector<1x128xf32>
    %65 = vector.broadcast %64 : vector<1x128xf32> to vector<16x128xf32>
    %66 = arith.mulf %54, %65 : vector<16x128xf32>
    %c0_34 = arith.constant 0 : index
    %c0_35 = arith.constant 0 : index
    %67 = vector.load %arg7[%c0_34, %c0_35] : memref<1x128xf32, #tpu.memory_space<vmem>>, vector<1x128xf32>
    %68 = vector.broadcast %67 : vector<1x128xf32> to vector<16x128xf32>
    %69 = arith.mulf %66, %68 : vector<16x128xf32>
    %c0_36 = arith.constant 0 : index
    %c0_37 = arith.constant 0 : index
    %70 = vector.load %arg8[%c0_36, %c0_37] : memref<1x128xf32, #tpu.memory_space<vmem>>, vector<1x128xf32>
    %71 = vector.broadcast %70 : vector<1x128xf32> to vector<16x128xf32>
    %72 = arith.addf %69, %71 : vector<16x128xf32>
    %c0_38 = arith.constant 0 : index
    %c0_39 = arith.constant 0 : index
    %73 = vector.load %arg9[%c0_38, %c0_39] : memref<128x128xf32, #tpu.memory_space<vmem>>, vector<128x128xf32>
    %cst_40 = arith.constant dense<0.000000e+00> : vector<16x128xf32>
    %74 = tpu.matmul %72, %73, %cst_40 {dimension_numbers = #tpu.dot_dimension_numbers<[1], [0], [0], [1], [0, 0, 1, 1], [], []>} : vector<16x128xf32>, vector<128x128xf32>, vector<16x128xf32> -> vector<16x128xf32>
    %c0_41 = arith.constant 0 : index
    %c0_42 = arith.constant 0 : index
    %75 = vector.load %arg10[%c0_41, %c0_42] : memref<9x128xf32, #tpu.memory_space<vmem>>, vector<9x128xf32>
    %cst_43 = arith.constant dense<0.000000e+00> : vector<40x128xf32>
    %76 = tpu.matmul %0, %75, %cst_43 {dimension_numbers = #tpu.dot_dimension_numbers<[1], [0], [0], [1], [0, 0, 1, 1], [], []>} : vector<40x9xf32>, vector<9x128xf32>, vector<40x128xf32> -> vector<40x128xf32>
    %cst_44 = arith.constant 0.000000e+00 : f32
    %77 = vector.broadcast %cst_44 : f32 to vector<16x128xf32>
    %78 = arith.select %20, %74, %77 : vector<16x128xi1>, vector<16x128xf32>
    %cst_45 = arith.constant 0.000000e+00 : f32
    %79 = vector.broadcast %cst_45 : f32 to vector<16x128xf32>
    %80 = arith.select %20, %79, %74 : vector<16x128xi1>, vector<16x128xf32>
    %cst_46 = arith.constant 0.000000e+00 : f32
    %81 = vector.broadcast %cst_46 : f32 to vector<40x128xf32>
    %82 = arith.select %23, %76, %81 : vector<40x128xi1>, vector<40x128xf32>
    %cst_47 = arith.constant 0.000000e+00 : f32
    %83 = vector.broadcast %cst_47 : f32 to vector<40x128xf32>
    %84 = arith.select %23, %83, %76 : vector<40x128xi1>, vector<40x128xf32>
    %85 = tpu.concatenate %78, %80, %82, %84 in 0 : vector<16x128xf32>, vector<16x128xf32>, vector<40x128xf32>, vector<40x128xf32> -> vector<112x128xf32>
    %cst_48 = arith.constant dense<0.000000e+00> : vector<16x128xf32>
    %86 = tpu.matmul %17, %85, %cst_48 {dimension_numbers = #tpu.dot_dimension_numbers<[1], [0], [0], [1], [0, 0, 1, 1], [], []>} : vector<16x112xf32>, vector<112x128xf32>, vector<16x128xf32> -> vector<16x128xf32>
    %87 = tpu.concatenate %86, %72 in 1 : vector<16x128xf32>, vector<16x128xf32> -> vector<16x256xf32>
    %c0_49 = arith.constant 0 : index
    %c0_50 = arith.constant 0 : index
    %88 = vector.load %arg11[%c0_49, %c0_50] : memref<256x128xf32, #tpu.memory_space<vmem>>, vector<256x128xf32>
    %cst_51 = arith.constant dense<0.000000e+00> : vector<16x128xf32>
    %89 = tpu.matmul %87, %88, %cst_51 {dimension_numbers = #tpu.dot_dimension_numbers<[1], [0], [0], [1], [0, 0, 1, 1], [], []>} : vector<16x256xf32>, vector<256x128xf32>, vector<16x128xf32> -> vector<16x128xf32>
    %c0_52 = arith.constant 0 : index
    %c0_53 = arith.constant 0 : index
    %90 = vector.load %arg12[%c0_52, %c0_53] : memref<1x128xf32, #tpu.memory_space<vmem>>, vector<1x128xf32>
    %91 = vector.broadcast %90 : vector<1x128xf32> to vector<16x128xf32>
    %92 = arith.addf %89, %91 : vector<16x128xf32>
    %cst_54 = arith.constant 0.000000e+00 : f32
    %93 = vector.broadcast %cst_54 : f32 to vector<16x128xf32>
    %94 = arith.maximumf %92, %93 : vector<16x128xf32>
    %cst_55 = arith.constant dense<0.000000e+00> : vector<128xf32>
    %95 = vector.multi_reduction <add>, %94, %cst_55 [0] : vector<16x128xf32> to vector<128xf32>
    %96 = vector.shape_cast %95 : vector<128xf32> to vector<1x128xf32>
    %c64_i32_56 = arith.constant 64 : i32
    %97 = tpu.dynamic_rotate %96 by %c64_i32_56 dim 1 : vector<1x128xf32>, i32 -> vector<1x128xf32>
    %98 = arith.addf %96, %97 : vector<1x128xf32>
    %cst_57 = arith.constant 3.125000e-02 : f32
    %99 = vector.broadcast %cst_57 : f32 to vector<1x128xf32>
    %100 = arith.mulf %98, %99 : vector<1x128xf32>
    %101 = vector.broadcast %100 : vector<1x128xf32> to vector<16x128xf32>
    %102 = arith.subf %94, %101 : vector<16x128xf32>
    %103 = arith.mulf %102, %102 : vector<16x128xf32>
    %cst_58 = arith.constant dense<0.000000e+00> : vector<128xf32>
    %104 = vector.multi_reduction <add>, %103, %cst_58 [0] : vector<16x128xf32> to vector<128xf32>
    %105 = vector.shape_cast %104 : vector<128xf32> to vector<1x128xf32>
    %c64_i32_59 = arith.constant 64 : i32
    %106 = tpu.dynamic_rotate %105 by %c64_i32_59 dim 1 : vector<1x128xf32>, i32 -> vector<1x128xf32>
    %107 = arith.addf %105, %106 : vector<1x128xf32>
    %cst_60 = arith.constant 3.125000e-02 : f32
    %108 = vector.broadcast %cst_60 : f32 to vector<1x128xf32>
    %109 = arith.mulf %107, %108 : vector<1x128xf32>
    %cst_61 = arith.constant 9.99999974E-6 : f32
    %110 = vector.broadcast %cst_61 : f32 to vector<1x128xf32>
    %111 = arith.addf %109, %110 : vector<1x128xf32>
    %112 = math.rsqrt %111 : vector<1x128xf32>
    %113 = vector.broadcast %112 : vector<1x128xf32> to vector<16x128xf32>
    %114 = arith.mulf %102, %113 : vector<16x128xf32>
    %c0_62 = arith.constant 0 : index
    %c0_63 = arith.constant 0 : index
    %115 = vector.load %arg13[%c0_62, %c0_63] : memref<1x128xf32, #tpu.memory_space<vmem>>, vector<1x128xf32>
    %116 = vector.broadcast %115 : vector<1x128xf32> to vector<16x128xf32>
    %117 = arith.mulf %114, %116 : vector<16x128xf32>
    %c0_64 = arith.constant 0 : index
    %c0_65 = arith.constant 0 : index
    %118 = vector.load %arg14[%c0_64, %c0_65] : memref<1x128xf32, #tpu.memory_space<vmem>>, vector<1x128xf32>
    %119 = vector.broadcast %118 : vector<1x128xf32> to vector<16x128xf32>
    %120 = arith.addf %117, %119 : vector<16x128xf32>
    %c0_66 = arith.constant 0 : index
    %c0_67 = arith.constant 0 : index
    %121 = vector.load %arg15[%c0_66, %c0_67] : memref<16x128xf32, #tpu.memory_space<vmem>>, vector<16x128xf32>
    tpu.vector_store %arg15[%c0_66, %c0_67], %120 {strides = array<i32>} : memref<16x128xf32, #tpu.memory_space<vmem>>, vector<16x128xf32>,
    return
  }
}

</mosaic_0001>

<llo_original>
// kernel: gbn_encoder_forward.1
$region0: #{gbn_encoder_forward.1}
  #allocation0 [shape = 'u32[]', space=smem, size = 0x4, offset = 0x4, fixed_abs, tag = 'smem constant byte address 0x4 - core index']
  #allocation1 [shape = 'u32[72,128]{1,0:T(1,128)}', space=vmem, size = 0x9000, scoped, tag = 'internal scratch']
  %s0 = inlined_call_operand.hbm [shape: f32[16,16], index: 0, kind: input, shape index: {}]
  %s1 = inlined_call_operand.vmem [shape: f32[40,9], index: 1, kind: input, shape index: {}]
  %s2 = inlined_call_operand.vmem [shape: s32[2,40], index: 2, kind: input, shape index: {}]
  %s3 = inlined_call_operand.hbm [shape: f32[16,128], index: 3, kind: input, shape index: {}]
  %s4 = inlined_call_operand.hbm [shape: f32[9,128], index: 4, kind: input, shape index: {}]
  %s5 = inlined_call_operand.hbm [shape: f32[144,128], index: 5, kind: input, shape index: {}]
  %s6 = inlined_call_operand.vmem [shape: f32[1,128], index: 6, kind: input, shape index: {}]
  %s7 = inlined_call_operand.vmem [shape: f32[1,128], index: 7, kind: input, shape index: {}]
  %s8 = inlined_call_operand.vmem [shape: f32[1,128], index: 8, kind: input, shape index: {}]
  %s9 = inlined_call_operand.vmem [shape: f32[128,128], index: 9, kind: input, shape index: {}]
  %s10 = inlined_call_operand.hbm [shape: f32[9,128], index: 10, kind: input, shape index: {}]
  %s11 = inlined_call_operand.hbm [shape: f32[256,128], index: 11, kind: input, shape index: {}]
  %s12 = inlined_call_operand.vmem [shape: f32[1,128], index: 12, kind: input, shape index: {}]
  %s13 = inlined_call_operand.hbm [shape: f32[1,128], index: 13, kind: input, shape index: {}]
  %s14 = inlined_call_operand.hbm [shape: f32[1,128], index: 14, kind: input, shape index: {}]
  %s15 = inlined_call_operand.vmem [shape: f32[16,128], index: 15, kind: output, shape index: {}]
  %s16 = sld [smem:[#allocation0]]
  $region102: #{gbn_encoder_forward.1} parent=0
    _
  %s18 = ssub.s32 1, %s16
  %s19 = scalar_select 0, %s18, %s16
  $region1: #{gbn_encoder_forward.1} parent=0
    #allocation2 [shape = 'u8[8192]{0}', space=vmem, size = 0x2000, scoped, tag = 'input window, operand 0, single buffered']
    #allocation3 [shape = 's32[1]{0}', space=sflag, size = 0x4, scoped, tag = 'scoped memory for gbn_encoder_forward.1']
    #allocation4 [shape = 'u8[8192]{0}', space=vmem, size = 0x2000, scoped, tag = 'input window, operand 3, single buffered']
    #allocation5 [shape = 's32[1]{0}', space=sflag, size = 0x4, scoped, tag = 'scoped memory for gbn_encoder_forward.1']
    #allocation6 [shape = 'u8[8192]{0}', space=vmem, size = 0x2000, scoped, tag = 'input window, operand 4, single buffered']
    #allocation7 [shape = 'u8[73728]{0}', space=vmem, size = 0x12000, scoped, tag = 'input window, operand 5, single buffered']
    #allocation8 [shape = 's32[1]{0}', space=sflag, size = 0x4, scoped, tag = 'scoped memory for gbn_encoder_forward.1']
    #allocation9 [shape = 'u8[8192]{0}', space=vmem, size = 0x2000, scoped, tag = 'input window, operand 10, single buffered']
    #allocation10 [shape = 'u8[131072]{0}', space=vmem, size = 0x20000, scoped, tag = 'input window, operand 11, single buffered']
    #allocation11 [shape = 's32[1]{0}', space=sflag, size = 0x4, scoped, tag = 'scoped memory for gbn_encoder_forward.1']
    #allocation12 [shape = 'u8[512]{0}', space=vmem, size = 0x400, scoped, tag = 'input window, operand 13, single buffered']
    #allocation13 [shape = 'u8[512]{0}', space=vmem, size = 0x400, scoped, tag = 'input window, operand 14, single buffered']
    #allocation14 [shape = 's32[1]{0}', space=sflag, size = 0x4, scoped, tag = 'scoped memory for gbn_encoder_forward.1']
    %20 = vsyncpa [#allocation3], 0
    %21 = vsyncpa [#allocation5], 0
    %22 = vsyncpa [#allocation8], 0
    %23 = vsyncpa [#allocation11], 0
    %24 = vsyncpa [#allocation14], 0
    // Predicated region
    $region2: #{gbn_encoder_forward.1} parent=1 // pred_check
      _
    $region3: #{gbn_encoder_forward.1} parent=1 // pred_check_branch
      %26 = sbr.rel (0) target = $region5
    $region4: #{gbn_encoder_forward.1} parent=1 // pred_region
      %28 = vsyncadd [#allocation3], 0
      %s29 = sshll.u32 %s0, 4
      %s30 = int_to_ptr.hbm [resolvable:$true] %s29
      %s31 = sshll.u32 [#allocation2], 4
      %s32 = int_to_ptr.vmem [resolvable:$true] %s31
      %37 = dma.hbm_to_vmem [thread:$0]  %s30, 256, %s32, [#allocation3], 128, 128, 8
    $region5: #{gbn_encoder_forward.1} parent=1 // pred_fallthru
      _
    // Predicated region
    $region6: #{gbn_encoder_forward.1} parent=1 // pred_check
      _
    $region7: #{gbn_encoder_forward.1} parent=1 // pred_check_branch
      %39 = sbr.rel (0) target = $region9
    $region8: #{gbn_encoder_forward.1} parent=1 // pred_region
      _
    $region9: #{gbn_encoder_forward.1} parent=1 // pred_fallthru
      _
    // Predicated region
    $region10: #{gbn_encoder_forward.1} parent=1 // pred_check
      _
    $region11: #{gbn_encoder_forward.1} parent=1 // pred_check_branch
      %41 = sbr.rel (0) target = $region13
    $region12: #{gbn_encoder_forward.1} parent=1 // pred_region
      _
    $region13: #{gbn_encoder_forward.1} parent=1 // pred_fallthru
      _
    // Predicated region
    $region14: #{gbn_encoder_forward.1} parent=1 // pred_check
      _
    $region15: #{gbn_encoder_forward.1} parent=1 // pred_check_branch
      %43 = sbr.rel (0) target = $region17
    $region16: #{gbn_encoder_forward.1} parent=1 // pred_region
      %45 = vsyncadd [#allocation5], 0
      %s46 = sshll.u32 %s3, 4
      %s47 = int_to_ptr.hbm [resolvable:$true] %s46
      %s48 = sshll.u32 [#allocation4], 4
      %s49 = int_to_ptr.vmem [resolvable:$true] %s48
      %54 = dma.hbm_to_vmem [thread:$0]  %s47, 256, %s49, [#allocation5], 128, 128, 8
    $region17: #{gbn_encoder_forward.1} parent=1 // pred_fallthru
      _
    // Predicated region
    $region18: #{gbn_encoder_forward.1} parent=1 // pred_check
      _
    $region19: #{gbn_encoder_forward.1} parent=1 // pred_check_branch
      %56 = sbr.rel (0) target = $region21
    $region20: #{gbn_encoder_forward.1} parent=1 // pred_region
      %58 = vsyncadd [#allocation5], 0
      %s59 = sshll.u32 %s4, 4
      %s60 = int_to_ptr.hbm [resolvable:$true] %s59
      %s61 = sshll.u32 [#allocation6], 4
      %s62 = int_to_ptr.vmem [resolvable:$true] %s61
      %67 = dma.hbm_to_vmem [thread:$0]  %s60, 256, %s62, [#allocation5], 128, 128, 8
    $region21: #{gbn_encoder_forward.1} parent=1 // pred_fallthru
      _
    // Predicated region
    $region22: #{gbn_encoder_forward.1} parent=1 // pred_check
      _
    $region23: #{gbn_encoder_forward.1} parent=1 // pred_check_branch
      %69 = sbr.rel (0) target = $region25
    $region24: #{gbn_encoder_forward.1} parent=1 // pred_region
      %71 = vsyncadd [#allocation8], 0
      %s72 = sshll.u32 %s5, 4
      %s73 = int_to_ptr.hbm [resolvable:$true] %s72
      %s74 = sshll.u32 [#allocation7], 4
      %s75 = int_to_ptr.vmem [resolvable:$true] %s74
      %80 = dma.hbm_to_vmem [thread:$0]  %s73, 2304, %s75, [#allocation8], 128, 128, 8
    $region25: #{gbn_encoder_forward.1} parent=1 // pred_fallthru
      _
    // Predicated region
    $region26: #{gbn_encoder_forward.1} parent=1 // pred_check
      _
    $region27: #{gbn_encoder_forward.1} parent=1 // pred_check_branch
      %82 = sbr.rel (0) target = $region29
    $region28: #{gbn_encoder_forward.1} parent=1 // pred_region
      _
    $region29: #{gbn_encoder_forward.1} parent=1 // pred_fallthru
      _
    // Predicated region
    $region30: #{gbn_encoder_forward.1} parent=1 // pred_check
      _
    $region31: #{gbn_encoder_forward.1} parent=1 // pred_check_branch
      %84 = sbr.rel (0) target = $region33
    $region32: #{gbn_encoder_forward.1} parent=1 // pred_region
      _
    $region33: #{gbn_encoder_forward.1} parent=1 // pred_fallthru
      _
    // Predicated region
    $region34: #{gbn_encoder_forward.1} parent=1 // pred_check
      _
    $region35: #{gbn_encoder_forward.1} parent=1 // pred_check_branch
      %86 = sbr.rel (0) target = $region37
    $region36: #{gbn_encoder_forward.1} parent=1 // pred_region
      _
    $region37: #{gbn_encoder_forward.1} parent=1 // pred_fallthru
      _
    // Predicated region
    $region38: #{gbn_encoder_forward.1} parent=1 // pred_check
      _
    $region39: #{gbn_encoder_forward.1} parent=1 // pred_check_branch
      %88 = sbr.rel (0) target = $region41
    $region40: #{gbn_encoder_forward.1} parent=1 // pred_region
      _
    $region41: #{gbn_encoder_forward.1} parent=1 // pred_fallthru
      _
    // Predicated region
    $region42: #{gbn_encoder_forward.1} parent=1 // pred_check
      _
    $region43: #{gbn_encoder_forward.1} parent=1 // pred_check_branch
      %90 = sbr.rel (0) target = $region45
    $region44: #{gbn_encoder_forward.1} parent=1 // pred_region
      %92 = vsyncadd [#allocation8], 0
      %s93 = sshll.u32 %s10, 4
      %s94 = int_to_ptr.hbm [resolvable:$true] %s93
      %s95 = sshll.u32 [#allocation9], 4
      %s96 = int_to_ptr.vmem [resolvable:$true] %s95
      %101 = dma.hbm_to_vmem [thread:$0]  %s94, 256, %s96, [#allocation8], 128, 128, 8
    $region45: #{gbn_encoder_forward.1} parent=1 // pred_fallthru
      _
    // Predicated region
    $region46: #{gbn_encoder_forward.1} parent=1 // pred_check
      _
    $region47: #{gbn_encoder_forward.1} parent=1 // pred_check_branch
      %103 = sbr.rel (0) target = $region49
    $region48: #{gbn_encoder_forward.1} parent=1 // pred_region
      %105 = vsyncadd [#allocation11], 0
      %s106 = sshll.u32 %s11, 4
      %s107 = int_to_ptr.hbm [resolvable:$true] %s106
      %s108 = sshll.u32 [#allocation10], 4
      %s109 = int_to_ptr.vmem [resolvable:$true] %s108
      %114 = dma.hbm_to_vmem [thread:$0]  %s107, 4096, %s109, [#allocation11], 128, 128, 8
    $region49: #{gbn_encoder_forward.1} parent=1 // pred_fallthru
      _
    // Predicated region
    $region50: #{gbn_encoder_forward.1} parent=1 // pred_check
      _
    $region51: #{gbn_encoder_forward.1} parent=1 // pred_check_branch
      %116 = sbr.rel (0) target = $region53
    $region52: #{gbn_encoder_forward.1} parent=1 // pred_region
      _
    $region53: #{gbn_encoder_forward.1} parent=1 // pred_fallthru
      _
    // Predicated region
    $region54: #{gbn_encoder_forward.1} parent=1 // pred_check
      _
    $region55: #{gbn_encoder_forward.1} parent=1 // pred_check_branch
      %118 = sbr.rel (0) target = $region57
    $region56: #{gbn_encoder_forward.1} parent=1 // pred_region
      %120 = vsyncadd [#allocation11], 0
      %s122 = sshll.u32 %s13, 4
      %s123 = int_to_ptr.hbm [resolvable:$true] %s122
      %s124 = sshll.u32 [#allocation12], 4
      %s125 = int_to_ptr.vmem [resolvable:$true] %s124
      %127 = dma.hbm_to_vmem [thread:$0]  %s123, 16, %s125, [#allocation11]
    $region57: #{gbn_encoder_forward.1} parent=1 // pred_fallthru
      _
    // Predicated region
    $region58: #{gbn_encoder_forward.1} parent=1 // pred_check
      _
    $region59: #{gbn_encoder_forward.1} parent=1 // pred_check_branch
      %129 = sbr.rel (0) target = $region61
    $region60: #{gbn_encoder_forward.1} parent=1 // pred_region
      %131 = vsyncadd [#allocation14], 0
      %s133 = sshll.u32 %s14, 4
      %s134 = int_to_ptr.hbm [resolvable:$true] %s133
      %s135 = sshll.u32 [#allocation13], 4
      %s136 = int_to_ptr.vmem [resolvable:$true] %s135
      %138 = dma.hbm_to_vmem [thread:$0]  %s134, 16, %s136, [#allocation14]
    $region61: #{gbn_encoder_forward.1} parent=1 // pred_fallthru
      _
    // Predicated region
    $region62: #{gbn_encoder_forward.1} parent=1 // pred_check
      _
    $region63: #{gbn_encoder_forward.1} parent=1 // pred_check_branch
      %140 = sbr.rel (0) target = $region65
    $region64: #{gbn_encoder_forward.1} parent=1 // pred_region
      %142 = dma.done [#allocation3], 256
    $region65: #{gbn_encoder_forward.1} parent=1 // pred_fallthru
      _
    // Predicated region
    $region66: #{gbn_encoder_forward.1} parent=1 // pred_check
      _
    $region67: #{gbn_encoder_forward.1} parent=1 // pred_check_branch
      %144 = sbr.rel (0) target = $region69
    $region68: #{gbn_encoder_forward.1} parent=1 // pred_region
      %146 = dma.done [#allocation5], 256
    $region69: #{gbn_encoder_forward.1} parent=1 // pred_fallthru
      _
    // Predicated region
    $region70: #{gbn_encoder_forward.1} parent=1 // pred_check
      _
    $region71: #{gbn_encoder_forward.1} parent=1 // pred_check_branch
      %148 = sbr.rel (0) target = $region73
    $region72: #{gbn_encoder_forward.1} parent=1 // pred_region
      %150 = dma.done [#allocation5], 256
    $region73: #{gbn_encoder_forward.1} parent=1 // pred_fallthru
      _
    // Predicated region
    $region74: #{gbn_encoder_forward.1} parent=1 // pred_check
      _
    $region75: #{gbn_encoder_forward.1} parent=1 // pred_check_branch
      %152 = sbr.rel (0) target = $region77
    $region76: #{gbn_encoder_forward.1} parent=1 // pred_region
      %154 = dma.done [#allocation8], 2304
    $region77: #{gbn_encoder_forward.1} parent=1 // pred_fallthru
      _
    // Predicated region
    $region78: #{gbn_encoder_forward.1} parent=1 // pred_check
      _
    $region79: #{gbn_encoder_forward.1} parent=1 // pred_check_branch
      %156 = sbr.rel (0) target = $region81
    $region80: #{gbn_encoder_forward.1} parent=1 // pred_region
      %158 = dma.done [#allocation8], 256
    $region81: #{gbn_encoder_forward.1} parent=1 // pred_fallthru
      _
    // Predicated region
    $region82: #{gbn_encoder_forward.1} parent=1 // pred_check
      _
    $region83: #{gbn_encoder_forward.1} parent=1 // pred_check_branch
      %160 = sbr.rel (0) target = $region85
    $region84: #{gbn_encoder_forward.1} parent=1 // pred_region
      %162 = dma.done [#allocation11], 4096
    $region85: #{gbn_encoder_forward.1} parent=1 // pred_fallthru
      _
    // Predicated region
    $region86: #{gbn_encoder_forward.1} parent=1 // pred_check
      _
    $region87: #{gbn_encoder_forward.1} parent=1 // pred_check_branch
      %164 = sbr.rel (0) target = $region89
    $region88: #{gbn_encoder_forward.1} parent=1 // pred_region
      %166 = dma.done [#allocation11], 16
    $region89: #{gbn_encoder_forward.1} parent=1 // pred_fallthru
      _
    // Predicated region
    $region90: #{gbn_encoder_forward.1} parent=1 // pred_check
      _
    $region91: #{gbn_encoder_forward.1} parent=1 // pred_check_branch
      %168 = sbr.rel (0) target = $region93
    $region92: #{gbn_encoder_forward.1} parent=1 // pred_region
      %170 = dma.done [#allocation14], 16
    $region93: #{gbn_encoder_forward.1} parent=1 // pred_fallthru
      _
    %v171 = vld [vmem:[%s1] sm:$0xff]
    %v172 = vld [vmem:[%s1 + $0x8] sm:$0xff]
    %v173 = vld [vmem:[%s1 + $0x10] sm:$0xff]
    %v174 = vld [vmem:[%s1 + $0x18] sm:$0xff]
    %v175 = vld [vmem:[%s1 + $0x20] sm:$0xff]
    %v176 = vld [vmem:[%s2] sm:$0x3]
    %v177 = vlaneseq
    %v178 = vshrl.u32 %v177, 7
    %v179 = vadd.s32 %v178, 8
    %v180 = vperm.slane %v176, 0
    %vm181 = vcmp.eq.s32.totalorder %v178, %v180
    %vm182 = vcmp.eq.s32.totalorder %v179, %v180
    %v183 = vsel %vm181, 1.0, 0.0
    %v184 = vsel %vm182, 1.0, 0.0
    %v185 = vperm.slane %v176, 1
    %vm186 = vcmp.eq.s32.totalorder %v178, %v185
    %vm187 = vcmp.eq.s32.totalorder %v179, %v185
    %v188 = vsel %vm186, 1.0, 0.0
    %v189 = vsel %vm187, 1.0, 0.0
    %vm190 = vcmask 326656
    %v192 = vsel %vm190, %v183, 0
    %v195 = vsel %vm190, %v184, 0
    %v198 = vsel %vm190, %v188, 0
    %v201 = vsel %vm190, %v189, 0
    %203 = vmatpush.xpose.msra.mxu0 0.0
    %204 = vmatpush.xpose.msra.mxu0 0.0
    %205 = vmatpush.xpose.msra.mxu0 0.0
    %206 = vmatpush.xpose.msra.mxu0 0.0
    %207 = vmatpush.xpose.msra.mxu0 0.0
    %208 = vmatpush.xpose.msra.mxu0 0.0
    %209 = vmatpush.xpose.msra.mxu0 0.0
    %210 = vmatpush.xpose.msra.mxu0 0.0
    %211 = vmatpush.xpose.msra.mxu0 0.0
    %212 = vmatpush.xpose.msra.mxu0 0.0
    %213 = vmatpush.xpose.msra.mxu0 0.0
    %214 = vmatpush.xpose.msra.mxu0 0.0
    %215 = vmatpush.xpose.msra.mxu0 0.0
    %216 = vmatpush.xpose.msra.mxu0 0.0
    %217 = vmatpush.xpose.msra.mxu0 %v201
    %218 = vmatpush.xpose.msra.mxu0 %v198
    %219 = vmatmul.f32.gmra.mxu0 %v192
    %v220 = vpop.f32.mrf.mxu0
    %v221 = vadd.f32 0.0, %v220
    %222 = vmatmul.f32.gmra.mxu0 %v195
    %v223 = vpop.f32.mrf.mxu0
    %v224 = vadd.f32 0.0, %v223
    %225 = vdwg.mxu0
    %226 = vxpose.xlu0.b32.start [1/16] %v221, 128
    %227 = vxpose.xlu0.b32.cont [2/16] %v224, 128
    %228 = vxpose.xlu0.b32.cont [3/16] 0.0, 128
    %229 = vxpose.xlu0.b32.cont [4/16] 0.0, 128
    %230 = vxpose.xlu0.b32.cont [5/16] 0.0, 128
    %231 = vxpose.xlu0.b32.cont [6/16] 0.0, 128
    %232 = vxpose.xlu0.b32.cont [7/16] 0.0, 128
    %233 = vxpose.xlu0.b32.cont [8/16] 0.0, 128
    %234 = vxpose.xlu0.b32.cont [9/16] 0.0, 128
    %235 = vxpose.xlu0.b32.cont [10/16] 0.0, 128
    %236 = vxpose.xlu0.b32.cont [11/16] 0.0, 128
    %237 = vxpose.xlu0.b32.cont [12/16] 0.0, 128
    %238 = vxpose.xlu0.b32.cont [13/16] 0.0, 128
    %239 = vxpose.xlu0.b32.cont [14/16] 0.0, 128
    %240 = vxpose.xlu0.b32.cont [15/16] 0.0, 128
    %241 = vxpose.xlu0.b32.end [16/16] 0.0, 128
    %v242 = vpop.trf.xlu0
    %v243 = vpop.trf.xlu0
    %v244 = vpop.trf.xlu0
    %v245 = vpop.trf.xlu0
    %v246 = vpop.trf.xlu0
    %v247 = vpop.trf.xlu0
    %v248 = vpop.trf.xlu0
    %v249 = vpop.trf.xlu0
    %v250 = vpop.trf.xlu0
    %v251 = vpop.trf.xlu0
    %v252 = vpop.trf.xlu0
    %v253 = vpop.trf.xlu0
    %v254 = vpop.trf.xlu0
    %v255 = vpop.trf.xlu0
    %v256 = vpop.trf.xlu0
    %v257 = vpop.trf.xlu0
    %260 = vrot.lane.b32.xlu0 %v242, 16
    %v261 = vpop.permute.xlu0 %260
    %262 = vrot.lane.b32.xlu0 %v243, 16
    %v263 = vpop.permute.xlu0 %262
    %266 = vrot.lane.b32.xlu0 %v183, 32
    %v267 = vpop.permute.xlu0 %266
    %268 = vrot.lane.b32.xlu0 %v184, 32
    %v269 = vpop.permute.xlu0 %268
    %272 = vrot.lane.b32.xlu0 %v188, 72
    %v273 = vpop.permute.xlu0 %272
    %274 = vrot.lane.b32.xlu0 %v189, 72
    %v275 = vpop.permute.xlu0 %274
    %vm278 = vcmask 130048
    %v279 = vsel %vm278, %v221, %v261
    %v280 = vsel %vm278, %v224, %v263
    %vm281 = vcmask 261120
    %v282 = vsel %vm281, %v279, %v267
    %v283 = vsel %vm281, %v280, %v269
    %vm284 = vcmask 588800
    %v285 = vsel %vm284, %v282, %v273
    %v286 = vsel %vm284, %v283, %v275
    %v287 = vlaneseq
    %v288 = vand.u32 %v287, 127
    %vm289 = vcmp.lt.s32.totalorder %v288, 64
    %v290 = vld [vmem:[#allocation2] sm:$0xff]
    %v291 = vld [vmem:[#allocation2 + $0x8] sm:$0xff]
    %v292 = vld [vmem:[#allocation4] sm:$0xff]
    %v293 = vld [vmem:[#allocation4 + $0x8] sm:$0xff]
    %v295 = vsel %vm278, %v290, 0
    %v298 = vsel %vm278, %v291, 0
    %300 = vmatpush.msra.mxu0 0.0
    %301 = vmatpush.msra.mxu0 0.0
    %302 = vmatpush.msra.mxu0 0.0
    %303 = vmatpush.msra.mxu0 0.0
    %304 = vmatpush.msra.mxu0 0.0
    %305 = vmatpush.msra.mxu0 0.0
    %306 = vmatpush.msra.mxu0 0.0
    %307 = vmatpush.msra.mxu0 0.0
    %308 = vmatpush.msra.mxu0 0.0
    %309 = vmatpush.msra.mxu0 0.0
    %310 = vmatpush.msra.mxu0 0.0
    %311 = vmatpush.msra.mxu0 0.0
    %312 = vmatpush.msra.mxu0 0.0
    %313 = vmatpush.msra.mxu0 0.0
    %314 = vmatpush.msra.mxu0 %v293
    %315 = vmatpush.msra.mxu0 %v292
    %316 = vmatmul.f32.gmra.mxu0 %v295
    %v317 = vpop.f32.mrf.mxu0
    %v318 = vadd.f32 0.0, %v317
    %319 = vmatmul.f32.gmra.mxu0 %v298
    %v320 = vpop.f32.mrf.mxu0
    %v321 = vadd.f32 0.0, %v320
    %322 = vdwg.mxu0
    %v323 = vld [vmem:[#allocation6] sm:$0xff]
    %v324 = vld [vmem:[#allocation6 + $0x8] sm:$0x1]
    %vm325 = vcmask 72704
    %v327 = vsel %vm325, %v171, 0
    %v330 = vsel %vm325, %v172, 0
    %v333 = vsel %vm325, %v173, 0
    %v336 = vsel %vm325, %v174, 0
    %v339 = vsel %vm325, %v175, 0
    %vm341 = vcmask 1040384
    %v343 = vsel %vm341, %v324, 0
    %345 = vmatpush.msra.mxu0 0.0
    %346 = vmatpush.msra.mxu0 0.0
    %347 = vmatpush.msra.mxu0 0.0
    %348 = vmatpush.msra.mxu0 0.0
    %349 = vmatpush.msra.mxu0 0.0
    %350 = vmatpush.msra.mxu0 0.0
    %351 = vmatpush.msra.mxu0 0.0
    %352 = vmatpush.msra.mxu0 0.0
    %353 = vmatpush.msra.mxu0 0.0
    %354 = vmatpush.msra.mxu0 0.0
    %355 = vmatpush.msra.mxu0 0.0
    %356 = vmatpush.msra.mxu0 0.0
    %357 = vmatpush.msra.mxu0 0.0
    %358 = vmatpush.msra.mxu0 0.0
    %359 = vmatpush.msra.mxu0 %v343
    %360 = vmatpush.msra.mxu0 %v323
    %361 = vmatmul.f32.gmra.mxu0 %v327
    %v362 = vpop.f32.mrf.mxu0
    %v363 = vadd.f32 0.0, %v362
    %364 = vmatmul.f32.gmra.mxu0 %v330
    %v365 = vpop.f32.mrf.mxu0
    %v366 = vadd.f32 0.0, %v365
    %367 = vmatmul.f32.gmra.mxu0 %v333
    %v368 = vpop.f32.mrf.mxu0
    %v369 = vadd.f32 0.0, %v368
    %370 = vmatmul.f32.gmra.mxu0 %v336
    %v371 = vpop.f32.mrf.mxu0
    %v372 = vadd.f32 0.0, %v371
    %373 = vmatmul.f32.gmra.mxu0 %v339
    %v374 = vpop.f32.mrf.mxu0
    %v375 = vadd.f32 0.0, %v374
    %376 = vdwg.mxu0
    %v377 = vsel %vm289, %v318, 0.0
    %v378 = vsel %vm289, %v321, 0.0
    %v379 = vsel %vm289, 0.0, %v318
    %v380 = vsel %vm289, 0.0, %v321
    %v381 = vsel %vm289, %v363, 0.0
    %v382 = vsel %vm289, %v366, 0.0
    %v383 = vsel %vm289, %v369, 0.0
    %v384 = vsel %vm289, %v372, 0.0
    %v385 = vsel %vm289, %v375, 0.0
    %v386 = vsel %vm289, 0.0, %v363
    %v387 = vsel %vm289, 0.0, %v366
    %v388 = vsel %vm289, 0.0, %v369
    %v389 = vsel %vm289, 0.0, %v372
    %v390 = vsel %vm289, 0.0, %v375
    %vm391 = vcmask 916480
    %v393 = vsel %vm391, %v285, 0
    %v396 = vsel %vm391, %v286, 0
    %398 = vmatpush.msra.mxu0 0.0
    %399 = vmatpush.msra.mxu0 0.0
    %400 = vmatpush.msra.mxu0 %v390
    %401 = vmatpush.msra.mxu0 %v389
    %402 = vmatpush.msra.mxu0 %v388
    %403 = vmatpush.msra.mxu0 %v387
    %404 = vmatpush.msra.mxu0 %v386
    %405 = vmatpush.msra.mxu0 %v385
    %406 = vmatpush.msra.mxu0 %v384
    %407 = vmatpush.msra.mxu0 %v383
    %408 = vmatpush.msra.mxu0 %v382
    %409 = vmatpush.msra.mxu0 %v381
    %410 = vmatpush.msra.mxu0 %v380
    %411 = vmatpush.msra.mxu0 %v379
    %412 = vmatpush.msra.mxu0 %v378
    %413 = vmatpush.msra.mxu0 %v377
    %414 = vmatmul.f32.gmra.mxu0 %v393
    %v415 = vpop.f32.mrf.mxu0
    %v416 = vadd.f32 0.0, %v415
    %417 = vmatmul.f32.gmra.mxu0 %v396
    %v418 = vpop.f32.mrf.mxu0
    %v419 = vadd.f32 0.0, %v418
    %420 = vdwg.mxu0
    %v421 = vld [vmem:[#allocation7] sm:$0xff]
    %v422 = vld [vmem:[#allocation7 + $0x8] sm:$0xff]
    %v423 = vld [vmem:[#allocation7 + $0x10] sm:$0xff]
    %v424 = vld [vmem:[#allocation7 + $0x18] sm:$0xff]
    %v425 = vld [vmem:[#allocation7 + $0x20] sm:$0xff]
    %v426 = vld [vmem:[#allocation7 + $0x28] sm:$0xff]
    %v427 = vld [vmem:[#allocation7 + $0x30] sm:$0xff]
    %v428 = vld [vmem:[#allocation7 + $0x38] sm:$0xff]
    %v429 = vld [vmem:[#allocation7 + $0x40] sm:$0xff]
    %v430 = vld [vmem:[#allocation7 + $0x48] sm:$0xff]
    %v431 = vld [vmem:[#allocation7 + $0x50] sm:$0xff]
    %v432 = vld [vmem:[#allocation7 + $0x58] sm:$0xff]
    %v433 = vld [vmem:[#allocation7 + $0x60] sm:$0xff]
    %v434 = vld [vmem:[#allocation7 + $0x68] sm:$0xff]
    %v435 = vld [vmem:[#allocation7 + $0x70] sm:$0xff]
    %v436 = vld [vmem:[#allocation7 + $0x78] sm:$0xff]
    %v437 = vld [vmem:[#allocation7 + $0x80] sm:$0xff]
    %v438 = vld [vmem:[#allocation7 + $0x88] sm:$0xff]
    %v439 = vld [vmem:[%s6] sm:$0x1]
    %v441 = vperm.slane %v439, 0
    %443 = vmatpush.msra.mxu0 %v436
    %444 = vmatpush.msra.mxu0 %v435
    %445 = vmatpush.msra.mxu0 %v434
    %446 = vmatpush.msra.mxu0 %v433
    %447 = vmatpush.msra.mxu0 %v432
    %448 = vmatpush.msra.mxu0 %v431
    %449 = vmatpush.msra.mxu0 %v430
    %450 = vmatpush.msra.mxu0 %v429
    %451 = vmatpush.msra.mxu0 %v428
    %452 = vmatpush.msra.mxu0 %v427
    %453 = vmatpush.msra.mxu0 %v426
    %454 = vmatpush.msra.mxu0 %v425
    %455 = vmatpush.msra.mxu0 %v424
    %456 = vmatpush.msra.mxu0 %v423
    %457 = vmatpush.msra.mxu0 %v422
    %458 = vmatpush.msra.mxu0 %v421
    %459 = vmatmul.f32.gmra.mxu0 %v416
    %v460 = vpop.f32.mrf.mxu0
    %v461 = vadd.f32 %v441, %v460
    %462 = vmatmul.f32.gmra.mxu0 %v419
    %v463 = vpop.f32.mrf.mxu0
    %v464 = vadd.f32 %v441, %v463
    %465 = vdwg.mxu0
    %466 = vmatpush.msra.mxu0 0.0
    %467 = vmatpush.msra.mxu0 0.0
    %468 = vmatpush.msra.mxu0 0.0
    %469 = vmatpush.msra.mxu0 0.0
    %470 = vmatpush.msra.mxu0 0.0
    %471 = vmatpush.msra.mxu0 0.0
    %472 = vmatpush.msra.mxu0 0.0
    %473 = vmatpush.msra.mxu0 0.0
    %474 = vmatpush.msra.mxu0 0.0
    %475 = vmatpush.msra.mxu0 0.0
    %476 = vmatpush.msra.mxu0 0.0
    %477 = vmatpush.msra.mxu0 0.0
    %478 = vmatpush.msra.mxu0 0.0
    %479 = vmatpush.msra.mxu0 0.0
    %480 = vmatpush.msra.mxu0 %v438
    %481 = vmatpush.msra.mxu0 %v437
    %482 = vmatmul.f32.gmra.mxu0 %v295
    %v483 = vpop.f32.mrf.mxu0
    %v484 = vadd.f32 %v461, %v483
    %485 = vmatmul.f32.gmra.mxu0 %v298
    %v486 = vpop.f32.mrf.mxu0
    %v487 = vadd.f32 %v464, %v486
    %488 = vdwg.mxu0
    %v489 = vmax.f32 %v484, 0.0
    %v490 = vmax.f32 %v487, 0.0
    %v491 = vadd.f32 %v489, %v490
    %v492 = vrot.slane %v491, 4
    %v493 = vadd.f32 %v491, %v492
    %v494 = vrot.slane %v493, 2
    %v495 = vadd.f32 %v493, %v494
    %v496 = vrot.slane %v495, 1
    %v497 = vadd.f32 %v495, %v496
    %498 = vrot.lane.b32.xlu0 %v497, 64
    %v499 = vpop.permute.xlu0 %498
    %v500 = vadd.f32 %v497, %v499
    %v501 = vmul.f32 %v500, 0.03125
    %v502 = vperm.slane %v501, 0
    %v503 = vsub.f32 %v489, %v502
    %v504 = vsub.f32 %v490, %v502
    %v505 = vmul.f32 %v503, %v503
    %v506 = vmul.f32 %v504, %v504
    %v507 = vadd.f32 %v505, %v506
    %v508 = vrot.slane %v507, 4
    %v509 = vadd.f32 %v507, %v508
    %v510 = vrot.slane %v509, 2
    %v511 = vadd.f32 %v509, %v510
    %v512 = vrot.slane %v511, 1
    %v513 = vadd.f32 %v511, %v512
    %514 = vrot.lane.b32.xlu0 %v513, 64
    %v515 = vpop.permute.xlu0 %514
    %v516 = vadd.f32 %v513, %v515
    %v517 = vmul.f32 %v516, 0.03125
    %v518 = vadd.f32 %v517, 1e-05
    %v519 = vrsqrt.pop %v518
    %v520 = vmul.f32 %v519, %v518
    %v521 = vmul.f32 %v520, %v519
    %v522 = vmul.f32 0.5, %v521
    %v523 = vsub.f32 1.5, %v522
    %v524 = vmul.f32 %v519, %v523
    %vm525 = vweird.f32 %v518
    %vm526 = vweird.f32 %v519
    %vm527 = vmor %vm525, %vm526
    %v528 = vsel %vm527, %v519, %v524
    %v529 = vperm.slane %v528, 0
    %v530 = vmul.f32 %v503, %v529
    %v531 = vmul.f32 %v504, %v529
    %v532 = vld [vmem:[%s7] sm:$0x1]
    %v534 = vperm.slane %v532, 0
    %v536 = vmul.f32 %v530, %v534
    %v537 = vmul.f32 %v531, %v534
    %v538 = vld [vmem:[%s8] sm:$0x1]
    %v540 = vperm.slane %v538, 0
    %v542 = vadd.f32 %v536, %v540
    %v543 = vadd.f32 %v537, %v540
    %v544 = vld [vmem:[%s9] sm:$0xff]
    %v545 = vld [vmem:[%s9 + $0x8] sm:$0xff]
    %v546 = vld [vmem:[%s9 + $0x10] sm:$0xff]
    %v547 = vld [vmem:[%s9 + $0x18] sm:$0xff]
    %v548 = vld [vmem:[%s9 + $0x20] sm:$0xff]
    %v549 = vld [vmem:[%s9 + $0x28] sm:$0xff]
    %v550 = vld [vmem:[%s9 + $0x30] sm:$0xff]
    %v551 = vld [vmem:[%s9 + $0x38] sm:$0xff]
    %v552 = vld [vmem:[%s9 + $0x40] sm:$0xff]
    %v553 = vld [vmem:[%s9 + $0x48] sm:$0xff]
    %v554 = vld [vmem:[%s9 + $0x50] sm:$0xff]
    %v555 = vld [vmem:[%s9 + $0x58] sm:$0xff]
    %v556 = vld [vmem:[%s9 + $0x60] sm:$0xff]
    %v557 = vld [vmem:[%s9 + $0x68] sm:$0xff]
    %v558 = vld [vmem:[%s9 + $0x70] sm:$0xff]
    %v559 = vld [vmem:[%s9 + $0x78] sm:$0xff]
    %560 = vmatpush.msra.mxu0 %v559
    %561 = vmatpush.msra.mxu0 %v558
    %562 = vmatpush.msra.mxu0 %v557
    %563 = vmatpush.msra.mxu0 %v556
    %564 = vmatpush.msra.mxu0 %v555
    %565 = vmatpush.msra.mxu0 %v554
    %566 = vmatpush.msra.mxu0 %v553
    %567 = vmatpush.msra.mxu0 %v552
    %568 = vmatpush.msra.mxu0 %v551
    %569 = vmatpush.msra.mxu0 %v550
    %570 = vmatpush.msra.mxu0 %v549
    %571 = vmatpush.msra.mxu0 %v548
    %572 = vmatpush.msra.mxu0 %v547
    %573 = vmatpush.msra.mxu0 %v546
    %574 = vmatpush.msra.mxu0 %v545
    %575 = vmatpush.msra.mxu0 %v544
    %576 = vmatmul.f32.gmra.mxu0 %v542
    %v577 = vpop.f32.mrf.mxu0
    %v578 = vadd.f32 0.0, %v577
    %579 = vmatmul.f32.gmra.mxu0 %v543
    %v580 = vpop.f32.mrf.mxu0
    %v581 = vadd.f32 0.0, %v580
    %582 = vdwg.mxu0
    %v583 = vld [vmem:[#allocation9] sm:$0xff]
    %v584 = vld [vmem:[#allocation9 + $0x8] sm:$0x1]
    %v586 = vsel %vm341, %v584, 0
    %588 = vmatpush.msra.mxu0 0.0
    %589 = vmatpush.msra.mxu0 0.0
    %590 = vmatpush.msra.mxu0 0.0
    %591 = vmatpush.msra.mxu0 0.0
    %592 = vmatpush.msra.mxu0 0.0
    %593 = vmatpush.msra.mxu0 0.0
    %594 = vmatpush.msra.mxu0 0.0
    %595 = vmatpush.msra.mxu0 0.0
    %596 = vmatpush.msra.mxu0 0.0
    %597 = vmatpush.msra.mxu0 0.0
    %598 = vmatpush.msra.mxu0 0.0
    %599 = vmatpush.msra.mxu0 0.0
    %600 = vmatpush.msra.mxu0 0.0
    %601 = vmatpush.msra.mxu0 0.0
    %602 = vmatpush.msra.mxu0 %v586
    %603 = vmatpush.msra.mxu0 %v583
    %604 = vmatmul.f32.gmra.mxu0 %v327
    %v605 = vpop.f32.mrf.mxu0
    %v606 = vadd.f32 0.0, %v605
    %607 = vmatmul.f32.gmra.mxu0 %v330
    %v608 = vpop.f32.mrf.mxu0
    %v609 = vadd.f32 0.0, %v608
    %610 = vmatmul.f32.gmra.mxu0 %v333
    %v611 = vpop.f32.mrf.mxu0
    %v612 = vadd.f32 0.0, %v611
    %613 = vmatmul.f32.gmra.mxu0 %v336
    %v614 = vpop.f32.mrf.mxu0
    %v615 = vadd.f32 0.0, %v614
    %616 = vmatmul.f32.gmra.mxu0 %v339
    %v617 = vpop.f32.mrf.mxu0
    %v618 = vadd.f32 0.0, %v617
    %619 = vdwg.mxu0
    %v620 = vsel %vm289, %v578, 0.0
    %v621 = vsel %vm289, %v581, 0.0
    %v622 = vsel %vm289, 0.0, %v578
    %v623 = vsel %vm289, 0.0, %v581
    %v624 = vsel %vm289, %v606, 0.0
    %v625 = vsel %vm289, %v609, 0.0
    %v626 = vsel %vm289, %v612, 0.0
    %v627 = vsel %vm289, %v615, 0.0
    %v628 = vsel %vm289, %v618, 0.0
    %v629 = vsel %vm289, 0.0, %v606
    %v630 = vsel %vm289, 0.0, %v609
    %v631 = vsel %vm289, 0.0, %v612
    %v632 = vsel %vm289, 0.0, %v615
    %v633 = vsel %vm289, 0.0, %v618
    %634 = vmatpush.msra.mxu0 0.0
    %635 = vmatpush.msra.mxu0 0.0
    %636 = vmatpush.msra.mxu0 %v633
    %637 = vmatpush.msra.mxu0 %v632
    %638 = vmatpush.msra.mxu0 %v631
    %639 = vmatpush.msra.mxu0 %v630
    %640 = vmatpush.msra.mxu0 %v629
    %641 = vmatpush.msra.mxu0 %v628
    %642 = vmatpush.msra.mxu0 %v627
    %643 = vmatpush.msra.mxu0 %v626
    %644 = vmatpush.msra.mxu0 %v625
    %645 = vmatpush.msra.mxu0 %v624
    %646 = vmatpush.msra.mxu0 %v623
    %647 = vmatpush.msra.mxu0 %v622
    %648 = vmatpush.msra.mxu0 %v621
    %649 = vmatpush.msra.mxu0 %v620
    %650 = vmatmul.f32.gmra.mxu0 %v393
    %v651 = vpop.f32.mrf.mxu0
    %v652 = vadd.f32 0.0, %v651
    %653 = vmatmul.f32.gmra.mxu0 %v396
    %v654 = vpop.f32.mrf.mxu0
    %v655 = vadd.f32 0.0, %v654
    %656 = vdwg.mxu0
    %v657 = vld [vmem:[#allocation10] sm:$0xff]
    %v658 = vld [vmem:[#allocation10 + $0x8] sm:$0xff]
    %v659 = vld [vmem:[#allocation10 + $0x10] sm:$0xff]
    %v660 = vld [vmem:[#allocation10 + $0x18] sm:$0xff]
    %v661 = vld [vmem:[#allocation10 + $0x20] sm:$0xff]
    %v662 = vld [vmem:[#allocation10 + $0x28] sm:$0xff]
    %v663 = vld [vmem:[#allocation10 + $0x30] sm:$0xff]
    %v664 = vld [vmem:[#allocation10 + $0x38] sm:$0xff]
    %v665 = vld [vmem:[#allocation10 + $0x40] sm:$0xff]
    %v666 = vld [vmem:[#allocation10 + $0x48] sm:$0xff]
    %v667 = vld [vmem:[#allocation10 + $0x50] sm:$0xff]
    %v668 = vld [vmem:[#allocation10 + $0x58] sm:$0xff]
    %v669 = vld [vmem:[#allocation10 + $0x60] sm:$0xff]
    %v670 = vld [vmem:[#allocation10 + $0x68] sm:$0xff]
    %v671 = vld [vmem:[#allocation10 + $0x70] sm:$0xff]
    %v672 = vld [vmem:[#allocation10 + $0x78] sm:$0xff]
    %v673 = vld [vmem:[#allocation10 + $0x80] sm:$0xff]
    %v674 = vld [vmem:[#allocation10 + $0x88] sm:$0xff]
    %v675 = vld [vmem:[#allocation10 + $0x90] sm:$0xff]
    %v676 = vld [vmem:[#allocation10 + $0x98] sm:$0xff]
    %v677 = vld [vmem:[#allocation10 + $0xa0] sm:$0xff]
    %v678 = vld [vmem:[#allocation10 + $0xa8] sm:$0xff]
    %v679 = vld [vmem:[#allocation10 + $0xb0] sm:$0xff]
    %v680 = vld [vmem:[#allocation10 + $0xb8] sm:$0xff]
    %v681 = vld [vmem:[#allocation10 + $0xc0] sm:$0xff]
    %v682 = vld [vmem:[#allocation10 + $0xc8] sm:$0xff]
    %v683 = vld [vmem:[#allocation10 + $0xd0] sm:$0xff]
    %v684 = vld [vmem:[#allocation10 + $0xd8] sm:$0xff]
    %v685 = vld [vmem:[#allocation10 + $0xe0] sm:$0xff]
    %v686 = vld [vmem:[#allocation10 + $0xe8] sm:$0xff]
    %v687 = vld [vmem:[#allocation10 + $0xf0] sm:$0xff]
    %v688 = vld [vmem:[#allocation10 + $0xf8] sm:$0xff]
    %v689 = vld [vmem:[%s12] sm:$0x1]
    %v691 = vperm.slane %v689, 0
    %693 = vmatpush.msra.mxu0 %v672
    %694 = vmatpush.msra.mxu0 %v671
    %695 = vmatpush.msra.mxu0 %v670
    %696 = vmatpush.msra.mxu0 %v669
    %697 = vmatpush.msra.mxu0 %v668
    %698 = vmatpush.msra.mxu0 %v667
    %699 = vmatpush.msra.mxu0 %v666
    %700 = vmatpush.msra.mxu0 %v665
    %701 = vmatpush.msra.mxu0 %v664
    %702 = vmatpush.msra.mxu0 %v663
    %703 = vmatpush.msra.mxu0 %v662
    %704 = vmatpush.msra.mxu0 %v661
    %705 = vmatpush.msra.mxu0 %v660
    %706 = vmatpush.msra.mxu0 %v659
    %707 = vmatpush.msra.mxu0 %v658
    %708 = vmatpush.msra.mxu0 %v657
    %709 = vmatmul.f32.gmra.mxu0 %v652
    %v710 = vpop.f32.mrf.mxu0
    %v711 = vadd.f32 %v691, %v710
    %712 = vmatmul.f32.gmra.mxu0 %v655
    %v713 = vpop.f32.mrf.mxu0
    %v714 = vadd.f32 %v691, %v713
    %715 = vdwg.mxu0
    %716 = vmatpush.msra.mxu0 %v688
    %717 = vmatpush.msra.mxu0 %v687
    %718 = vmatpush.msra.mxu0 %v686
    %719 = vmatpush.msra.mxu0 %v685
    %720 = vmatpush.msra.mxu0 %v684
    %721 = vmatpush.msra.mxu0 %v683
    %722 = vmatpush.msra.mxu0 %v682
    %723 = vmatpush.msra.mxu0 %v681
    %724 = vmatpush.msra.mxu0 %v680
    %725 = vmatpush.msra.mxu0 %v679
    %726 = vmatpush.msra.mxu0 %v678
    %727 = vmatpush.msra.mxu0 %v677
    %728 = vmatpush.msra.mxu0 %v676
    %729 = vmatpush.msra.mxu0 %v675
    %730 = vmatpush.msra.mxu0 %v674
    %731 = vmatpush.msra.mxu0 %v673
    %732 = vmatmul.f32.gmra.mxu0 %v542
    %v733 = vpop.f32.mrf.mxu0
    %v734 = vadd.f32 %v711, %v733
    %735 = vmatmul.f32.gmra.mxu0 %v543
    %v736 = vpop.f32.mrf.mxu0
    %v737 = vadd.f32 %v714, %v736
    %738 = vdwg.mxu0
    %v739 = vmax.f32 %v734, 0.0
    %v740 = vmax.f32 %v737, 0.0
    %v741 = vadd.f32 %v739, %v740
    %v742 = vrot.slane %v741, 4
    %v743 = vadd.f32 %v741, %v742
    %v744 = vrot.slane %v743, 2
    %v745 = vadd.f32 %v743, %v744
    %v746 = vrot.slane %v745, 1
    %v747 = vadd.f32 %v745, %v746
    %748 = vrot.lane.b32.xlu0 %v747, 64
    %v749 = vpop.permute.xlu0 %748
    %v750 = vadd.f32 %v747, %v749
    %v751 = vmul.f32 %v750, 0.03125
    %v752 = vperm.slane %v751, 0
    %v753 = vsub.f32 %v739, %v752
    %v754 = vsub.f32 %v740, %v752
    %v755 = vmul.f32 %v753, %v753
    %v756 = vmul.f32 %v754, %v754
    %v757 = vadd.f32 %v755, %v756
    %v758 = vrot.slane %v757, 4
    %v759 = vadd.f32 %v757, %v758
    %v760 = vrot.slane %v759, 2
    %v761 = vadd.f32 %v759, %v760
    %v762 = vrot.slane %v761, 1
    %v763 = vadd.f32 %v761, %v762
    %764 = vrot.lane.b32.xlu0 %v763, 64
    %v765 = vpop.permute.xlu0 %764
    %v766 = vadd.f32 %v763, %v765
    %v767 = vmul.f32 %v766, 0.03125
    %v768 = vadd.f32 %v767, 1e-05
    %v769 = vrsqrt.pop %v768
    %v770 = vmul.f32 %v769, %v768
    %v771 = vmul.f32 %v770, %v769
    %v772 = vmul.f32 0.5, %v771
    %v773 = vsub.f32 1.5, %v772
    %v774 = vmul.f32 %v769, %v773
    %vm775 = vweird.f32 %v768
    %vm776 = vweird.f32 %v769
    %vm777 = vmor %vm775, %vm776
    %v778 = vsel %vm777, %v769, %v774
    %v779 = vperm.slane %v778, 0
    %v780 = vmul.f32 %v753, %v779
    %v781 = vmul.f32 %v754, %v779
    %v782 = vld [vmem:[#allocation12] sm:$0x1]
    %v784 = vperm.slane %v782, 0
    %v786 = vmul.f32 %v780, %v784
    %v787 = vmul.f32 %v781, %v784
    %v788 = vld [vmem:[#allocation13] sm:$0x1]
    %v790 = vperm.slane %v788, 0
    %v792 = vadd.f32 %v786, %v790
    %v793 = vadd.f32 %v787, %v790
    %794 = vst [vmem:[%s15] sm:$0xff] %v792
    %795 = vst [vmem:[%s15 + $0x8] sm:$0xff] %v793
    // Predicated region
    $region94: #{gbn_encoder_forward.1} parent=1 // pred_check
      _
    $region95: #{gbn_encoder_forward.1} parent=1 // pred_check_branch
      %797 = sbr.rel (0) target = $region97
    $region96: #{gbn_encoder_forward.1} parent=1 // pred_region
      _
    $region97: #{gbn_encoder_forward.1} parent=1 // pred_fallthru
      _
    // Predicated region
    $region98: #{gbn_encoder_forward.1} parent=1 // pred_check
      _
    $region99: #{gbn_encoder_forward.1} parent=1 // pred_check_branch
      %799 = sbr.rel (0) target = $region101
    $region100: #{gbn_encoder_forward.1} parent=1 // pred_region
      _
    $region101: #{gbn_encoder_forward.1} parent=1 // pred_fallthru
      _
    %800 = vsyncpa [#allocation3], 1
    %801 = vsyncpa [#allocation5], 1
    %802 = vsyncpa [#allocation8], 1
    %803 = vsyncpa [#allocation11], 1
    %804 = vsyncpa [#allocation14], 1

</llo_original>
